<compile_context>
chip_gen: v5e
topology: v5e:2x2
jax: 0.10.0
libtpu: 0.0.40
codegen_flags: <defaults>
</compile_context>

<pallas_src>
import functools
import math

import jax
import jax.numpy as jnp
from jax.experimental import pallas as pl
from jax.experimental.pallas import tpu as pltpu


def _round_up(x, m):
    return (x + m - 1) // m * m


def rt_attention_kernel(qn_ref, kvn_ref, edge_ref, we_ref, se_ref, out_ref, *,
                        n, tile_i, d_pad, edge_factor, modulate_v, matmul_dtype):
    f32 = jnp.float32

    q_node = qn_ref[0]                        # (tile_i, d_pad) f32, softmax scale pre-folded
    k_node = kvn_ref[0, :, :d_pad]            # (n, d_pad) f32   (lane-aligned slice)
    v_node = kvn_ref[0, :, d_pad:]            # (n, d_pad) f32

    # Dominant matmul: project this i-tile's edge slab for all heads/parts at once.
    edge = edge_ref[0]                        # (tile_i*n, d_edge)
    if edge.dtype != matmul_dtype:
        edge = edge.astype(matmul_dtype)      # in-VMEM cast (HBM read stays 1x)
    qkv_e = jnp.dot(edge, we_ref[...], preferred_element_type=f32)   # (tile_i*n, ef*d_pad)
    qkv_e = qkv_e.reshape(tile_i, n, edge_factor * d_pad)

    qe = qkv_e[:, :, 0 * d_pad:1 * d_pad]     # lane-aligned slices (d_pad % 128 == 0)
    ke = qkv_e[:, :, 1 * d_pad:2 * d_pad]
    ve = qkv_e[:, :, 2 * d_pad:3 * d_pad]

    q = q_node[:, None, :] + qe               # q_node.unsqueeze(-2) + edge_q  (scale folded into q)
    k = k_node[None, :, :] + ke               # k_node.unsqueeze(-3) + edge_k
    if modulate_v:
        me = qkv_e[:, :, 3 * d_pad:4 * d_pad]
        v = v_node[None, :, :] * me + ve
    else:
        v = v_node[None, :, :] + ve

    # Per-head dots, broadcast across each head's output columns, via ONE
    # block-diagonal 0/1 indicator matmul (bf16 operands, f32 accumulation).
    qk = (q * k).reshape(tile_i * n, d_pad).astype(matmul_dtype)
    dots = jnp.dot(qk, se_ref[...], preferred_element_type=f32)       # (tile_i*n, d_pad)
    dots = dots.reshape(tile_i, n, d_pad)

    # Lane-dense softmax over j; normalize after the j-reduction.
    dots = dots - jnp.max(dots, axis=1, keepdims=True)
    p = jnp.exp(dots)                                                 # (tile_i, n, d_pad)
    l = jnp.sum(p, axis=1)                                            # (tile_i, d_pad)
    out_unnorm = jnp.sum(p * v, axis=1)                               # (tile_i, d_pad)
    out = out_unnorm * pl.reciprocal(l, approx=True)

    out_ref[0] = out.astype(out_ref.dtype)


def _vmem_limit_bytes():
    # ~48 MiB on v7x (64 MiB/TC physical), ~96-100 MiB on v5e/v6e (128 MiB).
    try:
        cap = pltpu.get_tpu_info().vmem_capacity_bytes
    except Exception:
        cap = 128 << 20
    return int(min(cap * 3 // 4, 100 << 20))


def _pick_tile_i(*, b, n, d_edge, d_pad, edge_factor, edge_bytes, mm_bytes,
                 budget_bytes, row_cap=2048):
    """Largest i-tile (divisor of n, sublane-aligned) whose padding-aware working
    set fits the VMEM budget, capped so the pipeline keeps several grid steps."""
    def pad2(rows, cols, itemsize):
        sub = {4: 8, 2: 16, 1: 32}.get(itemsize, 8)
        return _round_up(max(rows, 1), sub) * _round_up(max(cols, 1), 128) * itemsize

    def cost(t):
        rows = t * n
        c = 0
        c += 2 * pad2(rows, d_edge, edge_bytes)                # double-buffered edge DMA
        c += pad2(rows, edge_factor * d_pad, 4)                # f32 qkv_e slab
        c += 6 * pad2(rows, d_pad, 4)                          # q, k, v, q*k, dots, p (f32)
        c += pad2(rows, d_pad, 2)                              # bf16 qk MXU operand
        c += 2 * pad2(t, d_pad, 4)                             # q_node tile (double-buffered)
        c += 2 * pad2(n, 2 * d_pad, 4)                         # k/v node slab
        c += 2 * pad2(d_edge, edge_factor * d_pad, mm_bytes)   # edge weights
        c += 2 * pad2(d_pad, d_pad, mm_bytes)                  # block-diagonal indicator
        c += 2 * pad2(t, d_pad, 4)                             # output tile (double-buffered)
        return c

    candidates = [t for t in range(n, 0, -1)
                  if n % t == 0 and (t % 8 == 0 or t == n)]
    fitting = [t for t in candidates if cost(t) <= budget_bytes]
    if not fitting:
        fitting = [candidates[-1]]  # smallest legal tile; best effort
    # Keep rows-per-step moderate so there are several pipeline steps to overlap.
    capped = [t for t in fitting if t * n <= row_cap] or fitting
    # With a tiny batch, prefer >= 2 i-steps so both v7x TensorCores get programs.
    if b < 2:
        multi = [t for t in capped if n // t >= 2]
        if multi:
            capped = multi
    return max(capped)


def rt_attention(node, edge, mask, wn, we, *, n_heads, d_hid, modulate_v=None,
                 matmul_dtype=jnp.bfloat16):
    """Pallas equivalent of RTAttention.forward.

    node: (B, N, d_node); edge: (B, N, N, d_edge); mask: ignored (forward's
    use_topomask=False path). wn: (3*d_hid, d_node), we: (edge_factor*d_hid,
    d_edge) are nn.Linear weights (PyTorch (out, in) layout, no bias).
    """
    del mask  # unused by the reference forward
    b, n, d_node = node.shape
    _, _, m, d_edge = edge.shape
    assert m == n, "edge feature tensor must be square over nodes"
    # TODO(synk): pad n (and mask the softmax over padded j) for node counts that
    # are not a multiple of 8.
    assert n % 8 == 0, "n must be a multiple of 8 (sublane alignment)"
    edge_factor = 4 if modulate_v else 3
    dh = d_hid // n_heads
    assert dh * n_heads == d_hid
    scale = 1.0 / (d_hid ** 0.5)
    d_pad = _round_up(d_hid, 128)
    pad_cols = d_pad - d_hid
    f32 = jnp.float32

    # --- Weight column permutation: torch groups columns per-head [q|k|v(|m)];
    # regroup to part-major, head-major [Q all-heads | K | V | (M)] so the kernel
    # slices lane-dense d_pad-wide slabs (head h -> cols [h*dh, (h+1)*dh)).
    def _perm(parts):
        idx = []
        for p in range(parts):
            for h in range(n_heads):
                base = h * parts * dh + p * dh
                idx.extend(range(base, base + dh))
        return jnp.asarray(idx, dtype=jnp.int32)

    wn_pm = wn.T[:, _perm(3)].astype(f32)                    # (d_node, 3*d_hid)
    we_pm = we.T[:, _perm(edge_factor)].astype(f32)          # (d_edge, ef*d_hid)

    # --- Node projections hoisted out of the kernel (tiny XLA matmul); the
    # softmax scale is folded into q_node (and the Q edge-weight columns below).
    qkvn = jnp.dot(node.astype(matmul_dtype), wn_pm.astype(matmul_dtype),
                   preferred_element_type=f32)               # (b, n, 3*d_hid)
    q_node = qkvn[..., 0 * d_hid:1 * d_hid] * scale
    k_node = qkvn[..., 1 * d_hid:2 * d_hid]
    v_node = qkvn[..., 2 * d_hid:3 * d_hid]

    def _pad_last(x):
        if pad_cols == 0:
            return x
        widths = [(0, 0)] * (x.ndim - 1) + [(0, pad_cols)]
        return jnp.pad(x, widths)

    q_node_p = _pad_last(q_node)                                              # (b, n, d_pad)
    kv_node_p = jnp.concatenate([_pad_last(k_node), _pad_last(v_node)], -1)   # (b, n, 2*d_pad)

    # --- Padded, part-major edge weights (scale folded into Q columns).
    we_parts = [we_pm[:, p * d_hid:(p + 1) * d_hid] for p in range(edge_factor)]
    we_parts[0] = we_parts[0] * scale
    we_p = jnp.concatenate([_pad_last(w) for w in we_parts], -1).astype(matmul_dtype)

    # --- Fused block-diagonal head indicator: SE[c, c'] = 1 iff c, c' are real
    # columns of the same head. One matmul both computes the per-head dot
    # products and broadcasts them across that head's output columns.
    col = jnp.arange(d_pad)
    real = col < d_hid
    head_of = jnp.where(real, col // dh, -1)
    se = ((head_of[:, None] == head_of[None, :]) & real[:, None] & real[None, :])
    se = se.astype(matmul_dtype)                                              # (d_pad, d_pad)

    edge_flat = edge.reshape(b, n * n, d_edge)   # kept in its input dtype; cast in-kernel

    vmem_limit = _vmem_limit_bytes()
    tile_i = _pick_tile_i(
        b=b, n=n, d_edge=d_edge, d_pad=d_pad, edge_factor=edge_factor,
        edge_bytes=jnp.dtype(edge_flat.dtype).itemsize,
        mm_bytes=jnp.dtype(matmul_dtype).itemsize,
        budget_bytes=int(vmem_limit * 0.75))

    kernel = functools.partial(
        rt_attention_kernel, n=n, tile_i=tile_i, d_pad=d_pad,
        edge_factor=edge_factor, modulate_v=bool(modulate_v),
        matmul_dtype=matmul_dtype)

    # TODO(synk): on v6e, consider pipeline_mode=pl.Buffered(3) on the edge
    # BlockSpec (and fp8 edge projection on v7x) if xprof shows exposed DMA.
    out_p = pl.pallas_call(
        kernel,
        out_shape=jax.ShapeDtypeStruct((b, n, d_pad), f32),
        grid=(b, n // tile_i),
        in_specs=[
            pl.BlockSpec((1, tile_i, d_pad), lambda bb, ii: (bb, ii, 0)),         # q_node tile
            pl.BlockSpec((1, n, 2 * d_pad), lambda bb, ii: (bb, 0, 0)),           # k/v node (all rows)
            pl.BlockSpec((1, tile_i * n, d_edge), lambda bb, ii: (bb, ii, 0)),    # edge i-tile
            pl.BlockSpec((d_edge, edge_factor * d_pad), lambda bb, ii: (0, 0)),   # edge weights
            pl.BlockSpec((d_pad, d_pad), lambda bb, ii: (0, 0)),                  # head indicator
        ],
        out_specs=pl.BlockSpec((1, tile_i, d_pad), lambda bb, ii: (bb, ii, 0)),
        compiler_params=pltpu.CompilerParams(
            dimension_semantics=("parallel", "parallel"),
            vmem_limit_bytes=vmem_limit),
    )(q_node_p, kv_node_p, edge_flat, we_p, se)

    return out_p[..., :d_hid] if pad_cols else out_p


def ref_forward(node, edge, wn, we, *, n_heads, d_hid, modulate_v=None,
                matmul_dtype=jnp.bfloat16):
    """Pure-JAX mirror of the PyTorch forward (same matmul operand dtype as kernel)."""
    b, n, _ = node.shape
    edge_factor = 4 if modulate_v else 3
    scale = 1.0 / (d_hid ** 0.5)

    def _proj(x, w):
        return jnp.einsum('...i,oi->...o', x.astype(matmul_dtype), w.astype(matmul_dtype),
                          preferred_element_type=jnp.float32)

    qkv_node = _proj(node, wn)                                        # (b, n, 3*d_hid)
    qkv_node = qkv_node.reshape(b, n, n_heads, 3 * d_hid // n_heads)  # b n h (3dh)
    qkv_node = qkv_node.transpose(0, 2, 1, 3)                         # b h n (3dh)
    q_node, k_node, v_node = jnp.split(qkv_node, 3, axis=-1)

    qkv_edge = _proj(edge, we)                                        # (b, n, n, ef*d_hid)
    qkv_edge = qkv_edge.reshape(b, n, n, n_heads, edge_factor * d_hid // n_heads)
    qkv_edge = qkv_edge.transpose(0, 3, 1, 2, 4)                      # b h n m d
    qkv_edge = jnp.split(qkv_edge, edge_factor, axis=-1)

    q = q_node[:, :, :, None, :] + qkv_edge[0]
    k = k_node[:, :, None, :, :] + qkv_edge[1]
    if modulate_v:
        v = v_node[:, :, None, :, :] * qkv_edge[3] + qkv_edge[2]
    else:
        v = v_node[:, :, None, :, :] + qkv_edge[2]

    dots = scale * jnp.einsum('bhijd,bhijd->bhij', q, k)
    attn = jax.nn.softmax(dots, axis=-1)
    out = jnp.einsum('bhij,bhijd->bhid', attn, v)
    out = out.transpose(0, 2, 1, 3).reshape(b, n, d_hid)              # b n (h d)
    return out


if __name__ == "__main__":
    B, N = 2, 8
    D_NODE, D_EDGE, D_HID, N_HEADS = 32, 16, 32, 4

    key = jax.random.PRNGKey(0)
    k1, k2, k3, k4, k5 = jax.random.split(key, 5)
    node = jax.random.normal(k1, (B, N, D_NODE), jnp.float32)
    edge = jax.random.normal(k2, (B, N, N, D_EDGE), jnp.float32)
    mask = jnp.ones((B, N, N), jnp.float32)  # unused by forward (use_topomask=False)

    # Deterministic synthetic weights (PyTorch nn.Linear layout: (out, in), no bias).
    wn = jax.random.normal(k3, (3 * D_HID, D_NODE), jnp.float32) / math.sqrt(D_NODE)
    we3 = jax.random.normal(k4, (3 * D_HID, D_EDGE), jnp.float32) / math.sqrt(D_EDGE)
    we4 = jax.random.normal(k5, (4 * D_HID, D_EDGE), jnp.float32) / math.sqrt(D_EDGE)

    # Standard path (edge_factor = 3).
    out = rt_attention(node, edge, mask, wn, we3, n_heads=N_HEADS, d_hid=D_HID)
    out = jax.block_until_ready(out)
    ref = ref_forward(node, edge, wn, we3, n_heads=N_HEADS, d_hid=D_HID)
    assert out.shape == (B, N, D_HID)
    # bf16 MXU operands (edge projection + q*k indicator matmul) -> ~1% numerics.
    assert jnp.allclose(out, ref, atol=3e-2, rtol=3e-2), "mismatch vs reference (ef=3)"

    # modulate_v path (edge_factor = 4).
    out_m = rt_attention(node, edge, mask, wn, we4, n_heads=N_HEADS, d_hid=D_HID,
                         modulate_v=True)
    out_m = jax.block_until_ready(out_m)
    ref_m = ref_forward(node, edge, wn, we4, n_heads=N_HEADS, d_hid=D_HID, modulate_v=True)
    assert jnp.allclose(out_m, ref_m, atol=3e-2, rtol=3e-2), "mismatch vs reference (modulate_v)"

    print("KERNEL_OK")
</pallas_src>

<mosaic_0001>
module attributes {stable_mosaic.version = 11 : i64} {
  func.func @rt_attention_kernel(%arg0: i32, %arg1: i32, %arg2: memref<1x8x128xf32, #tpu.memory_space<vmem>>, %arg3: memref<1x8x256xf32, #tpu.memory_space<vmem>>, %arg4: memref<1x64x16xf32, #tpu.memory_space<vmem>>, %arg5: memref<16x384xbf16, #tpu.memory_space<vmem>>, %arg6: memref<128x128xbf16, #tpu.memory_space<vmem>>, %arg7: memref<1x8x128xf32, #tpu.memory_space<vmem>>) attributes {dimension_semantics = [#tpu.dimension_semantics<parallel>, #tpu.dimension_semantics<parallel>], iteration_bounds = array<i64: 2, 1>, scalar_prefetch = 0 : i64, scratch_operands = 0 : i64, tpu.core_type = #tpu.core_type<tc>, window_params = [{transform_indices = @transform_0, window_bounds = array<i64: 1, 8, 128>}, {transform_indices = @transform_1, window_bounds = array<i64: 1, 8, 256>}, {transform_indices = @transform_2, window_bounds = array<i64: 1, 64, 16>}, {pipeline_mode = #tpu.pipeline_mode<synchronous>, transform_indices = @transform_3, window_bounds = array<i64: 16, 384>}, {pipeline_mode = #tpu.pipeline_mode<synchronous>, transform_indices = @transform_4, window_bounds = array<i64: 128, 128>}, {transform_indices = @transform_5, window_bounds = array<i64: 1, 8, 128>}]} {
    %c0 = arith.constant 0 : index
    %c0_0 = arith.constant 0 : index
    %c0_1 = arith.constant 0 : index
    %0 = vector.load %arg2[%c0, %c0_0, %c0_1] : memref<1x8x128xf32, #tpu.memory_space<vmem>>, vector<1x8x128xf32>
    %1 = vector.shape_cast %0 : vector<1x8x128xf32> to vector<8x128xf32>
    %c0_2 = arith.constant 0 : index
    %c0_3 = arith.constant 0 : index
    %c0_4 = arith.constant 0 : index
    %2 = vector.load %arg3[%c0_2, %c0_3, %c0_4] : memref<1x8x256xf32, #tpu.memory_space<vmem>>, vector<1x8x128xf32>
    %3 = vector.shape_cast %2 : vector<1x8x128xf32> to vector<8x128xf32>
    %c0_5 = arith.constant 0 : index
    %c0_6 = arith.constant 0 : index
    %c128 = arith.constant 128 : index
    %4 = vector.load %arg3[%c0_5, %c0_6, %c128] : memref<1x8x256xf32, #tpu.memory_space<vmem>>, vector<1x8x128xf32>
    %5 = vector.shape_cast %4 : vector<1x8x128xf32> to vector<8x128xf32>
    %c0_7 = arith.constant 0 : index
    %c0_8 = arith.constant 0 : index
    %c0_9 = arith.constant 0 : index
    %6 = vector.load %arg4[%c0_7, %c0_8, %c0_9] : memref<1x64x16xf32, #tpu.memory_space<vmem>>, vector<1x64x16xf32>
    %7 = vector.shape_cast %6 : vector<1x64x16xf32> to vector<64x16xf32>
    %8 = arith.truncf %7 : vector<64x16xf32> to vector<64x16xbf16>
    %c0_10 = arith.constant 0 : index
    %c0_11 = arith.constant 0 : index
    %9 = vector.load %arg5[%c0_10, %c0_11] : memref<16x384xbf16, #tpu.memory_space<vmem>>, vector<16x384xbf16>
    %cst = arith.constant dense<0.000000e+00> : vector<64x384xf32>
    %10 = tpu.matmul %8, %9, %cst {dimension_numbers = #tpu.dot_dimension_numbers<[1], [0], [0], [1], [0, 0, 1, 1], [], []>} : vector<64x16xbf16>, vector<16x384xbf16>, vector<64x384xf32> -> vector<64x384xf32>
    %11 = vector.shape_cast %10 : vector<64x384xf32> to vector<8x8x384xf32>
    %12 = vector.extract_strided_slice %11 {offsets = [0, 0, 0], sizes = [8, 8, 128], strides = [1, 1, 1]} : vector<8x8x384xf32> to vector<8x8x128xf32>
    %13 = vector.extract_strided_slice %11 {offsets = [0, 0, 128], sizes = [8, 8, 128], strides = [1, 1, 1]} : vector<8x8x384xf32> to vector<8x8x128xf32>
    %14 = vector.extract_strided_slice %11 {offsets = [0, 0, 256], sizes = [8, 8, 128], strides = [1, 1, 1]} : vector<8x8x384xf32> to vector<8x8x128xf32>
    %15 = vector.shape_cast %1 : vector<8x128xf32> to vector<8x1x128xf32>
    %16 = vector.broadcast %15 : vector<8x1x128xf32> to vector<8x8x128xf32>
    %17 = arith.addf %16, %12 : vector<8x8x128xf32>
    %18 = vector.shape_cast %3 : vector<8x128xf32> to vector<1x8x128xf32>
    %19 = vector.broadcast %18 : vector<1x8x128xf32> to vector<8x8x128xf32>
    %20 = arith.addf %19, %13 : vector<8x8x128xf32>
    %21 = vector.shape_cast %5 : vector<8x128xf32> to vector<1x8x128xf32>
    %22 = vector.broadcast %21 : vector<1x8x128xf32> to vector<8x8x128xf32>
    %23 = arith.addf %22, %14 : vector<8x8x128xf32>
    %24 = arith.mulf %17, %20 : vector<8x8x128xf32>
    %25 = vector.shape_cast %24 : vector<8x8x128xf32> to vector<64x128xf32>
    %26 = arith.truncf %25 : vector<64x128xf32> to vector<64x128xbf16>
    %c0_12 = arith.constant 0 : index
    %c0_13 = arith.constant 0 : index
    %27 = vector.load %arg6[%c0_12, %c0_13] : memref<128x128xbf16, #tpu.memory_space<vmem>>, vector<128x128xbf16>
    %cst_14 = arith.constant dense<0.000000e+00> : vector<64x128xf32>
    %28 = tpu.matmul %26, %27, %cst_14 {dimension_numbers = #tpu.dot_dimension_numbers<[1], [0], [0], [1], [0, 0, 1, 1], [], []>} : vector<64x128xbf16>, vector<128x128xbf16>, vector<64x128xf32> -> vector<64x128xf32>
    %29 = vector.shape_cast %28 : vector<64x128xf32> to vector<8x8x128xf32>
    %cst_15 = arith.constant dense<0xFF800000> : vector<8x128xf32>
    %30 = vector.multi_reduction <maximumf>, %29, %cst_15 [1] : vector<8x8x128xf32> to vector<8x128xf32>
    %31 = vector.shape_cast %30 : vector<8x128xf32> to vector<8x1x128xf32>
    %32 = vector.broadcast %31 : vector<8x1x128xf32> to vector<8x8x128xf32>
    %33 = arith.subf %29, %32 : vector<8x8x128xf32>
    %34 = math.exp %33 : vector<8x8x128xf32>
    %cst_16 = arith.constant dense<0.000000e+00> : vector<8x128xf32>
    %35 = vector.multi_reduction <add>, %34, %cst_16 [1] : vector<8x8x128xf32> to vector<8x128xf32>
    %36 = arith.mulf %34, %23 : vector<8x8x128xf32>
    %cst_17 = arith.constant dense<0.000000e+00> : vector<8x128xf32>
    %37 = vector.multi_reduction <add>, %36, %cst_17 [1] : vector<8x8x128xf32> to vector<8x128xf32>
    %38 = tpu.reciprocal %35 {approx = true} : vector<8x128xf32> -> vector<8x128xf32>
    %39 = arith.mulf %37, %38 : vector<8x128xf32>
    %c0_18 = arith.constant 0 : index
    %c0_19 = arith.constant 0 : index
    %c0_20 = arith.constant 0 : index
    %40 = vector.load %arg7[%c0_18, %c0_19, %c0_20] : memref<1x8x128xf32, #tpu.memory_space<vmem>>, vector<1x8x128xf32>
    %41 = vector.shape_cast %40 : vector<1x8x128xf32> to vector<8x128xf32>
    %42 = vector.shape_cast %39 : vector<8x128xf32> to vector<1x8x128xf32>
    tpu.vector_store %arg7[%c0_18, %c0_19, %c0_20], %42 {strides = array<i32>} : memref<1x8x128xf32, #tpu.memory_space<vmem>>, vector<1x8x128xf32>,
    return
  }
  func.func @transform_0(%arg0: i32, %arg1: i32) -> (i32, i32, i32) {
    %c0_i32 = arith.constant 0 : i32
    %c0_i32_0 = arith.constant 0 : i32
    return %arg0, %arg1, %c0_i32 : i32, i32, i32
  }
  func.func @transform_1(%arg0: i32, %arg1: i32) -> (i32, i32, i32) {
    %c0_i32 = arith.constant 0 : i32
    %c0_i32_0 = arith.constant 0 : i32
    %c0_i32_1 = arith.constant 0 : i32
    return %arg0, %c0_i32, %c0_i32_0 : i32, i32, i32
  }
  func.func @transform_2(%arg0: i32, %arg1: i32) -> (i32, i32, i32) {
    %c0_i32 = arith.constant 0 : i32
    %c0_i32_0 = arith.constant 0 : i32
    return %arg0, %arg1, %c0_i32 : i32, i32, i32
  }
  func.func @transform_3(%arg0: i32, %arg1: i32) -> (i32, i32) {
    %c0_i32 = arith.constant 0 : i32
    %c0_i32_0 = arith.constant 0 : i32
    %c0_i32_1 = arith.constant 0 : i32
    return %c0_i32, %c0_i32_0 : i32, i32
  }
  func.func @transform_4(%arg0: i32, %arg1: i32) -> (i32, i32) {
    %c0_i32 = arith.constant 0 : i32
    %c0_i32_0 = arith.constant 0 : i32
    %c0_i32_1 = arith.constant 0 : i32
    return %c0_i32, %c0_i32_0 : i32, i32
  }
  func.func @transform_5(%arg0: i32, %arg1: i32) -> (i32, i32, i32) {
    %c0_i32 = arith.constant 0 : i32
    %c0_i32_0 = arith.constant 0 : i32
    return %arg0, %arg1, %c0_i32 : i32, i32, i32
  }
}

</mosaic_0001>

<llo_original>
// kernel: tpu_custom_call.1
$region0: #{tpu_custom_call.1}
  #allocation0 [shape = 'u32[]', space=smem, size = 0x4, offset = 0x4, fixed_abs, tag = 'smem constant byte address 0x4 - core index']
  #allocation1 [shape = 'u32[72,128]{1,0:T(1,128)}', space=vmem, size = 0x9000, scoped, tag = 'internal scratch']
  %s0 = inlined_call_operand.vmem [shape: f32[2,8,128], index: 0, kind: input, shape index: {}]
  %s1 = inlined_call_operand.vmem [shape: f32[2,8,256], index: 1, kind: input, shape index: {}]
  %s2 = inlined_call_operand.vmem [shape: f32[2,64,16], index: 2, kind: input, shape index: {}]
  %s3 = inlined_call_operand.vmem [shape: bf16[16,384], index: 3, kind: input, shape index: {}]
  %s4 = inlined_call_operand.vmem [shape: bf16[128,128], index: 4, kind: input, shape index: {}]
  %s5 = inlined_call_operand.hbm [shape: f32[2,8,128], index: 5, kind: output, shape index: {}]
  %s6 = sld [smem:[#allocation0]]
  $region53: #{tpu_custom_call.1} parent=0
    _
  %s8 = ssub.s32 1, %s6
  %s9 = scalar_select 0, %s8, %s6
  $region1: #{tpu_custom_call.1} parent=0
    #allocation2 [shape = 'u8[8192]{0}', space=vmem, size = 0x2000, scoped, tag = 'output window, operand 0']
    #allocation3 [shape = 's32[2]{0}', space=sflag, size = 0x8, scoped, tag = 'scoped memory for tpu_custom_call.1']
    %10 = vsyncpa [#allocation3], 0
    %s11 = scalar_lea.sflag [#allocation3], 1
    %12 = vsyncpa %s11, 0
    loop: start=0, step=1, limit=4
    $region2: #{tpu_custom_call.1} parent=1 // loop_pre_header
      _
    $region3: #{tpu_custom_call.1} parent=1 // loop_header
      %s14 = sphi 0, %s18
      %p15 = scmp.ge.s32.totalorder %s14, 4
      %s21 = sphi 0, %s33
      %s22 = sphi 0, %s29
      %s23 = sphi 0, %s21
      %s24 = sphi 0, %s22
      %s25 = sphi 0, %s23
      %s26 = sphi 0, %s24
      %s38 = sphi 0, %s40
      %s41 = sphi 0, %s38
      %s42 = sphi 0, %s41
      %s58 = sphi 0, %s42
      %s64 = sphi 0, %s66
      %s67 = sphi 0, %s64
      %s68 = sphi 0, %s67
      %s84 = sphi 0, %s68
      %s92 = sphi 0, %s94
      %s95 = sphi 0, %s92
      %s96 = sphi 0, %s95
      %s112 = sphi 0, %s96
      %s116 = sphi 0, %s116
      %s118 = sphi 0, %s116
      %s119 = sphi 0, %s118
      %s133 = sphi 0, %s119
      %s137 = sphi 0, %s137
      %s139 = sphi 0, %s137
      %s140 = sphi 0, %s139
      %s154 = sphi 0, %s140
      %s162 = sphi 0, %s164
      %s165 = sphi 0, %s162
      %s166 = sphi 0, %s165
      %s182 = sphi 0, %s166
    $region4: #{tpu_custom_call.1} parent=1 // loop_header_branch
      %17 = sbr.rel (%p15) target = $region8
    $region5: #{tpu_custom_call.1} parent=1 // loop_body
      %s19 = ssub.s32 %s14, 1
      %s20 = ssub.s32 %s14, 2
      %s27 = sadd.s32 1, %s22
      %p28 = scmp.ge.s32.totalorder %s27, 1
      %s29 = scalar_select %p28, 0, %s27
      %s30 = sadd.s32 1, %s21
      %s31 = scalar_select %p28, %s30, %s21
      %p32 = scmp.ge.s32.totalorder %s31, 2
      %s33 = scalar_select %p32, 0, %s31
      %s34 = ssub.s32 %s21, %s33
      %s35 = ssub.s32 %s22, %s29
      %s36 = sor.u32 %s34, %s35
      %p37 = scmp.eq.s32.totalorder %s36, 0
      %s39 = sadd.s32 %s38, 1
      %s40 = scalar_select %p37, %s38, %s39
      %p43 = pneg %p37
      %p44 = scmp.eq.s32.totalorder %s14, 1
      %p45 = por %p43, %p44
      %p46 = scmp.ne.s32.totalorder %s38, %s41
      %p47 = scmp.eq.s32.totalorder %s14, 0
      %p48 = por %p46, %p47
      %p49 = scmp.ne.s32.totalorder %s38, %s41
      %p50 = scmp.eq.s32.totalorder %s19, 1
      %p51 = por %p49, %p50
      %p52 = scmp.ne.s32.totalorder %s41, %s42
      %p53 = scmp.eq.s32.totalorder %s19, 0
      %p54 = por %p52, %p53
      %p55 = scmp.ne.s32.totalorder %s41, %s42
      %p56 = scmp.eq.s32.totalorder %s20, 1
      %p57 = por %p55, %p56
      %p59 = scmp.ne.s32.totalorder %s42, %s58
      %p60 = scmp.eq.s32.totalorder %s20, 0
      %p61 = por %p59, %p60
      %s62 = ssub.s32 %s21, %s33
      %p63 = scmp.eq.s32.totalorder %s62, 0
      %s65 = sadd.s32 %s64, 1
      %s66 = scalar_select %p63, %s64, %s65
      %p69 = pneg %p63
      %p70 = scmp.eq.s32.totalorder %s14, 1
      %p71 = por %p69, %p70
      %p72 = scmp.ne.s32.totalorder %s64, %s67
      %p73 = scmp.eq.s32.totalorder %s14, 0
      %p74 = por %p72, %p73
      %p75 = scmp.ne.s32.totalorder %s64, %s67
      %p76 = scmp.eq.s32.totalorder %s19, 1
      %p77 = por %p75, %p76
      %p78 = scmp.ne.s32.totalorder %s67, %s68
      %p79 = scmp.eq.s32.totalorder %s19, 0
      %p80 = por %p78, %p79
      %p81 = scmp.ne.s32.totalorder %s67, %s68
      %p82 = scmp.eq.s32.totalorder %s20, 1
      %p83 = por %p81, %p82
      %p85 = scmp.ne.s32.totalorder %s68, %s84
      %p86 = scmp.eq.s32.totalorder %s20, 0
      %p87 = por %p85, %p86
      %s88 = ssub.s32 %s21, %s33
      %s89 = ssub.s32 %s22, %s29
      %s90 = sor.u32 %s88, %s89
      %p91 = scmp.eq.s32.totalorder %s90, 0
      %s93 = sadd.s32 %s92, 1
      %s94 = scalar_select %p91, %s92, %s93
      %p97 = pneg %p91
      %p98 = scmp.eq.s32.totalorder %s14, 1
      %p99 = por %p97, %p98
      %p100 = scmp.ne.s32.totalorder %s92, %s95
      %p101 = scmp.eq.s32.totalorder %s14, 0
      %p102 = por %p100, %p101
      %p103 = scmp.ne.s32.totalorder %s92, %s95
      %p104 = scmp.eq.s32.totalorder %s19, 1
      %p105 = por %p103, %p104
      %p106 = scmp.ne.s32.totalorder %s95, %s96
      %p107 = scmp.eq.s32.totalorder %s19, 0
      %p108 = por %p106, %p107
      %p109 = scmp.ne.s32.totalorder %s95, %s96
      %p110 = scmp.eq.s32.totalorder %s20, 1
      %p111 = por %p109, %p110
      %p113 = scmp.ne.s32.totalorder %s96, %s112
      %p114 = scmp.eq.s32.totalorder %s20, 0
      %p115 = por %p113, %p114
      %s117 = sadd.s32 %s116, 1
      %p120 = scmp.eq.s32.totalorder %s14, 1
      %p121 = scmp.ne.s32.totalorder %s116, %s118
      %p122 = scmp.eq.s32.totalorder %s14, 0
      %p123 = por %p121, %p122
      %p124 = scmp.ne.s32.totalorder %s116, %s118
      %p125 = scmp.eq.s32.totalorder %s19, 1
      %p126 = por %p124, %p125
      %p127 = scmp.ne.s32.totalorder %s118, %s119
      %p128 = scmp.eq.s32.totalorder %s19, 0
      %p129 = por %p127, %p128
      %p130 = scmp.ne.s32.totalorder %s118, %s119
      %p131 = scmp.eq.s32.totalorder %s20, 1
      %p132 = por %p130, %p131
      %p134 = scmp.ne.s32.totalorder %s119, %s133
      %p135 = scmp.eq.s32.totalorder %s20, 0
      %p136 = por %p134, %p135
      %s138 = sadd.s32 %s137, 1
      %p141 = scmp.eq.s32.totalorder %s14, 1
      %p142 = scmp.ne.s32.totalorder %s137, %s139
      %p143 = scmp.eq.s32.totalorder %s14, 0
      %p144 = por %p142, %p143
      %p145 = scmp.ne.s32.totalorder %s137, %s139
      %p146 = scmp.eq.s32.totalorder %s19, 1
      %p147 = por %p145, %p146
      %p148 = scmp.ne.s32.totalorder %s139, %s140
      %p149 = scmp.eq.s32.totalorder %s19, 0
      %p150 = por %p148, %p149
      %p151 = scmp.ne.s32.totalorder %s139, %s140
      %p152 = scmp.eq.s32.totalorder %s20, 1
      %p153 = por %p151, %p152
      %p155 = scmp.ne.s32.totalorder %s140, %s154
      %p156 = scmp.eq.s32.totalorder %s20, 0
      %p157 = por %p155, %p156
      %s158 = ssub.s32 %s21, %s33
      %s159 = ssub.s32 %s22, %s29
      %s160 = sor.u32 %s158, %s159
      %p161 = scmp.eq.s32.totalorder %s160, 0
      %s163 = sadd.s32 %s162, 1
      %s164 = scalar_select %p161, %s162, %s163
      %p167 = pneg %p161
      %p168 = scmp.eq.s32.totalorder %s14, 1
      %p169 = por %p167, %p168
      %p170 = scmp.ne.s32.totalorder %s162, %s165
      %p171 = scmp.eq.s32.totalorder %s14, 0
      %p172 = por %p170, %p171
      %p173 = scmp.ne.s32.totalorder %s162, %s165
      %p174 = scmp.eq.s32.totalorder %s19, 1
      %p175 = por %p173, %p174
      %p176 = scmp.ne.s32.totalorder %s165, %s166
      %p177 = scmp.eq.s32.totalorder %s19, 0
      %p178 = por %p176, %p177
      %p179 = scmp.ne.s32.totalorder %s165, %s166
      %p180 = scmp.eq.s32.totalorder %s20, 1
      %p181 = por %p179, %p180
      %p183 = scmp.ne.s32.totalorder %s166, %s182
      %p184 = scmp.eq.s32.totalorder %s20, 0
      %p185 = por %p183, %p184
      %p186 = scmp.le.s32.totalorder 1, %s14
      %p187 = scmp.lt.s32.totalorder %s14, 3
      %p188 = pnand %p186, %p187
      %p189 = pneg %p188
      // Predicated region
      $region9: #{tpu_custom_call.1} parent=5 // pred_check
        _
      $region10: #{tpu_custom_call.1} parent=5 // pred_check_branch
        %191 = sbr.rel (%p188) target = $region12
      $region11: #{tpu_custom_call.1} parent=5 // pred_region
        %s192 = ssub.s32 %s14, 1
        // Predicated region
        $region13: #{tpu_custom_call.1} parent=11 // pred_check
          %p193 = pneg %p129
        $region14: #{tpu_custom_call.1} parent=11 // pred_check_branch
          %195 = sbr.rel (%p193) target = $region16
        $region15: #{tpu_custom_call.1} parent=11 // pred_region
          _
        $region16: #{tpu_custom_call.1} parent=11 // pred_fallthru
          _
        // Predicated region
        $region17: #{tpu_custom_call.1} parent=11 // pred_check
          %p196 = pneg %p150
        $region18: #{tpu_custom_call.1} parent=11 // pred_check_branch
          %198 = sbr.rel (%p196) target = $region20
        $region19: #{tpu_custom_call.1} parent=11 // pred_region
          _
        $region20: #{tpu_custom_call.1} parent=11 // pred_fallthru
          _
      $region12: #{tpu_custom_call.1} parent=5 // pred_fallthru
        _
      %p199 = scmp.lt.s32.totalorder %s14, 2
      // Predicated region
      $region21: #{tpu_custom_call.1} parent=5 // pred_check
        %p200 = pneg %p199
      $region22: #{tpu_custom_call.1} parent=5 // pred_check_branch
        %202 = sbr.rel (%p200) target = $region24
      $region23: #{tpu_custom_call.1} parent=5 // pred_region
        // Predicated region
        $region25: #{tpu_custom_call.1} parent=23 // pred_check
          %p203 = pneg %p48
        $region26: #{tpu_custom_call.1} parent=23 // pred_check_branch
          %205 = sbr.rel (%p203) target = $region28
        $region27: #{tpu_custom_call.1} parent=23 // pred_region
          %p206 = scmp.lt.s32.totalorder %s21, 1
          %s207 = scalar_select %p206, %s21, 1
          %p208 = scmp.lt.s32.totalorder %s22, 0
          %s209 = scalar_select %p208, %s22, 0
          %s210 = sadd.s32 %s209, %s207
          %s211 = smul.addr %s210, 8
          %s212 = scalar_lea.vmem %s0, %s211
        $region28: #{tpu_custom_call.1} parent=23 // pred_fallthru
          _
        // Predicated region
        $region29: #{tpu_custom_call.1} parent=23 // pred_check
          %p213 = pneg %p74
        $region30: #{tpu_custom_call.1} parent=23 // pred_check_branch
          %215 = sbr.rel (%p213) target = $region32
        $region31: #{tpu_custom_call.1} parent=23 // pred_region
          %p216 = scmp.lt.s32.totalorder %s21, 1
          %s217 = scalar_select %p216, %s21, 1
          %s218 = smul.addr %s217, 2
          %s219 = smul.addr %s218, 8
          %s220 = scalar_lea.vmem %s1, %s219
        $region32: #{tpu_custom_call.1} parent=23 // pred_fallthru
          _
        // Predicated region
        $region33: #{tpu_custom_call.1} parent=23 // pred_check
          %p221 = pneg %p102
        $region34: #{tpu_custom_call.1} parent=23 // pred_check_branch
          %223 = sbr.rel (%p221) target = $region36
        $region35: #{tpu_custom_call.1} parent=23 // pred_region
          %s224 = smul.u32 8, %s22
          %p225 = scmp.lt.s32.totalorder %s21, 1
          %s226 = scalar_select %p225, %s21, 1
          %p227 = scmp.lt.s32.totalorder %s224, 7
          %s228 = scalar_select %p227, %s224, 7
          %s229 = smul.addr %s226, 8
          %s230 = sadd.s32 %s228, %s229
          %s231 = smul.addr %s230, 8
          %s232 = scalar_lea.vmem %s2, %s231
          %s233 = smul.u32 8, %s22
        $region36: #{tpu_custom_call.1} parent=23 // pred_fallthru
          _
      $region24: #{tpu_custom_call.1} parent=5 // pred_fallthru
        _
      %p234 = scmp.le.s32.totalorder 1, %s14
      %p235 = scmp.lt.s32.totalorder %s14, 3
      %p236 = pnand %p234, %p235
      %p237 = pneg %p236
      // Predicated region
      $region37: #{tpu_custom_call.1} parent=5 // pred_check
        _
      $region38: #{tpu_custom_call.1} parent=5 // pred_check_branch
        %239 = sbr.rel (%p236) target = $region40
      $region39: #{tpu_custom_call.1} parent=5 // pred_region
        %s240 = ssub.s32 %s14, 1
        %p241 = scmp.lt.s32.totalorder %s23, 1
        %s242 = scalar_select %p241, %s23, 1
        %p243 = scmp.lt.s32.totalorder %s24, 0
        %s244 = scalar_select %p243, %s24, 0
        %s245 = sadd.s32 %s244, %s242
        %s246 = smul.addr %s245, 8
        %s247 = scalar_lea.vmem %s0, %s246
        %p248 = pneg %p54
        %p249 = pneg %p51
        %p250 = scmp.lt.s32.totalorder %s23, 1
        %s251 = scalar_select %p250, %s23, 1
        %s252 = smul.addr %s251, 2
        %s253 = smul.addr %s252, 8
        %s254 = scalar_lea.vmem %s1, %s253
        %p255 = pneg %p80
        %p256 = pneg %p77
        %s257 = smul.u32 8, %s24
        %p258 = scmp.lt.s32.totalorder %s23, 1
        %s259 = scalar_select %p258, %s23, 1
        %p260 = scmp.lt.s32.totalorder %s257, 7
        %s261 = scalar_select %p260, %s257, 7
        %s262 = smul.addr %s259, 8
        %s263 = sadd.s32 %s261, %s262
        %s264 = smul.addr %s263, 8
        %s265 = scalar_lea.vmem %s2, %s264
        %p266 = pneg %p108
        %p267 = pneg %p105
        %p268 = pneg %p129
        %p269 = pneg %p126
        %p270 = pneg %p150
        %p271 = pneg %p147
        %p272 = pneg %p178
        %p273 = pneg %p175
        %s274 = sand.u32 %s165, 1
        %s275 = scalar_lea.sflag [#allocation3], %s274
        %s276 = sand.u32 %s165, 1
        %s277 = smul.addr %s276, 8
        %s278 = scalar_lea.vmem [#allocation2], %s277
        %p279 = scmp.lt.s32.totalorder %s23, 1
        %s280 = scalar_select %p279, %s23, 1
        %p281 = scmp.lt.s32.totalorder %s24, 0
        %s282 = scalar_select %p281, %s24, 0
        %s283 = sadd.s32 %s282, %s280
        %s284 = smul.addr %s283, 8
        %s285 = scalar_lea.vmem %s0, %s284
        %p286 = scmp.lt.s32.totalorder %s23, 1
        %s287 = scalar_select %p286, %s23, 1
        %s288 = smul.addr %s287, 2
        %s289 = smul.addr %s288, 8
        %s290 = scalar_lea.vmem %s1, %s289
        %s291 = smul.u32 8, %s24
        %p292 = scmp.lt.s32.totalorder %s23, 1
        %s293 = scalar_select %p292, %s23, 1
        %p294 = scmp.lt.s32.totalorder %s291, 7
        %s295 = scalar_select %p294, %s291, 7
        %s296 = smul.addr %s293, 8
        %s297 = sadd.s32 %s295, %s296
        %s298 = smul.addr %s297, 8
        %s299 = scalar_lea.vmem %s2, %s298
        %s300 = smul.u32 8, %s24
        %v302 = vld [vmem:[%s285] sm:$0xff]
        %v303 = vld [vmem:[%s290] sm:$0xff]
        %v304 = vld [vmem:[%s290 + $0x8] sm:$0xff]
        %v305 = vld [vmem:[%s299] sm:$0xff]
        %v306 = vld [vmem:[%s299 + $0x8] sm:$0xff]
        %v307 = vld [vmem:[%s299 + $0x10] sm:$0xff]
        %v308 = vld [vmem:[%s299 + $0x18] sm:$0xff]
        %v309 = vld [vmem:[%s299 + $0x20] sm:$0xff]
        %v310 = vld [vmem:[%s299 + $0x28] sm:$0xff]
        %v311 = vld [vmem:[%s299 + $0x30] sm:$0xff]
        %v312 = vld [vmem:[%s299 + $0x38] sm:$0xff]
        %v313 = vpack.c.bf16 %v306, %v305
        %v314 = vpack.c.bf16 %v308, %v307
        %v315 = vpack.c.bf16 %v310, %v309
        %v316 = vpack.c.bf16 %v312, %v311
        %v317 = vld [vmem:[%s3] sm:$0xff]
        %v318 = vld [vmem:[%s3 + $0x8] sm:$0xf]
        %v319 = vld [vmem:[%s3 + $0xc] sm:$0xff]
        %v320 = vld [vmem:[%s3 + $0x14] sm:$0xf]
        %v325 = vunpack.c.l.b16 %v317
        %v326 = vunpack.c.h.b16 %v317
        %v327 = vunpack.c.l.b16 %v318
        %v328 = vunpack.c.l.b16 %v319
        %v329 = vunpack.c.h.b16 %v319
        %v330 = vunpack.c.l.b16 %v320
        %v331 = vpack.c.b16 %v328, %v325
        %v332 = vpack.c.b16 %v329, %v326
        %v333 = vpack.c.b16 %v330, %v327
        %vm337 = vcmask 130048
        %v339 = vsel %vm337, %v313, 0
        %v342 = vsel %vm337, %v314, 0
        %v345 = vsel %vm337, %v315, 0
        %v348 = vsel %vm337, %v316, 0
        %350 = vmatpush.bf16.msra.mxu0 0
        %351 = vmatpush.bf16.msra.mxu0 0
        %352 = vmatpush.bf16.msra.mxu0 0
        %353 = vmatpush.bf16.msra.mxu0 0
        %354 = vmatpush.bf16.msra.mxu0 0
        %355 = vmatpush.bf16.msra.mxu0 0
        %356 = vmatpush.bf16.msra.mxu0 0
        %357 = vmatpush.bf16.msra.mxu0 %v331
        %358 = vmatmul.bf16.gmra.mxu0 %v339
        %v359 = vpop.f32.mrf.mxu0
        %v360 = vadd.f32 0.0, %v359
        %v361 = vpop.f32.mrf.mxu0
        %v362 = vadd.f32 0.0, %v361
        %363 = vmatmul.bf16.gmra.mxu0 %v342
        %v364 = vpop.f32.mrf.mxu0
        %v365 = vadd.f32 0.0, %v364
        %v366 = vpop.f32.mrf.mxu0
        %v367 = vadd.f32 0.0, %v366
        %368 = vmatmul.bf16.gmra.mxu0 %v345
        %v369 = vpop.f32.mrf.mxu0
        %v370 = vadd.f32 0.0, %v369
        %v371 = vpop.f32.mrf.mxu0
        %v372 = vadd.f32 0.0, %v371
        %373 = vmatmul.bf16.gmra.mxu0 %v348
        %v374 = vpop.f32.mrf.mxu0
        %v375 = vadd.f32 0.0, %v374
        %v376 = vpop.f32.mrf.mxu0
        %v377 = vadd.f32 0.0, %v376
        %378 = vdwg.mxu0
        %379 = vmatpush.bf16.msra.mxu0 0
        %380 = vmatpush.bf16.msra.mxu0 0
        %381 = vmatpush.bf16.msra.mxu0 0
        %382 = vmatpush.bf16.msra.mxu0 0
        %383 = vmatpush.bf16.msra.mxu0 0
        %384 = vmatpush.bf16.msra.mxu0 0
        %385 = vmatpush.bf16.msra.mxu0 0
        %386 = vmatpush.bf16.msra.mxu0 %v332
        %387 = vmatmul.bf16.gmra.mxu0 %v339
        %v388 = vpop.f32.mrf.mxu0
        %v389 = vadd.f32 0.0, %v388
        %v390 = vpop.f32.mrf.mxu0
        %v391 = vadd.f32 0.0, %v390
        %392 = vmatmul.bf16.gmra.mxu0 %v342
        %v393 = vpop.f32.mrf.mxu0
        %v394 = vadd.f32 0.0, %v393
        %v395 = vpop.f32.mrf.mxu0
        %v396 = vadd.f32 0.0, %v395
        %397 = vmatmul.bf16.gmra.mxu0 %v345
        %v398 = vpop.f32.mrf.mxu0
        %v399 = vadd.f32 0.0, %v398
        %v400 = vpop.f32.mrf.mxu0
        %v401 = vadd.f32 0.0, %v400
        %402 = vmatmul.bf16.gmra.mxu0 %v348
        %v403 = vpop.f32.mrf.mxu0
        %v404 = vadd.f32 0.0, %v403
        %v405 = vpop.f32.mrf.mxu0
        %v406 = vadd.f32 0.0, %v405
        %407 = vdwg.mxu0
        %408 = vmatpush.bf16.msra.mxu0 0
        %409 = vmatpush.bf16.msra.mxu0 0
        %410 = vmatpush.bf16.msra.mxu0 0
        %411 = vmatpush.bf16.msra.mxu0 0
        %412 = vmatpush.bf16.msra.mxu0 0
        %413 = vmatpush.bf16.msra.mxu0 0
        %414 = vmatpush.bf16.msra.mxu0 0
        %415 = vmatpush.bf16.msra.mxu0 %v333
        %416 = vmatmul.bf16.gmra.mxu0 %v339
        %v417 = vpop.f32.mrf.mxu0
        %v418 = vadd.f32 0.0, %v417
        %v419 = vpop.f32.mrf.mxu0
        %v420 = vadd.f32 0.0, %v419
        %421 = vmatmul.bf16.gmra.mxu0 %v342
        %v422 = vpop.f32.mrf.mxu0
        %v423 = vadd.f32 0.0, %v422
        %v424 = vpop.f32.mrf.mxu0
        %v425 = vadd.f32 0.0, %v424
        %426 = vmatmul.bf16.gmra.mxu0 %v345
        %v427 = vpop.f32.mrf.mxu0
        %v428 = vadd.f32 0.0, %v427
        %v429 = vpop.f32.mrf.mxu0
        %v430 = vadd.f32 0.0, %v429
        %431 = vmatmul.bf16.gmra.mxu0 %v348
        %v432 = vpop.f32.mrf.mxu0
        %v433 = vadd.f32 0.0, %v432
        %v434 = vpop.f32.mrf.mxu0
        %v435 = vadd.f32 0.0, %v434
        %436 = vdwg.mxu0
        %v438 = vrot.slane %v302, 1
        %v439 = vrot.slane %v302, 2
        %v440 = vrot.slane %v302, 3
        %v441 = vrot.slane %v302, 4
        %v442 = vrot.slane %v302, 5
        %v443 = vrot.slane %v302, 6
        %v444 = vrot.slane %v302, 7
        %v445 = vperm.slane %v302, 0
        %v446 = vperm.slane %v438, 0
        %v447 = vperm.slane %v439, 0
        %v448 = vperm.slane %v440, 0
        %v449 = vperm.slane %v441, 0
        %v450 = vperm.slane %v442, 0
        %v451 = vperm.slane %v443, 0
        %v452 = vperm.slane %v444, 0
        %v461 = vadd.f32 %v445, %v360
        %v462 = vadd.f32 %v446, %v362
        %v463 = vadd.f32 %v447, %v365
        %v464 = vadd.f32 %v448, %v367
        %v465 = vadd.f32 %v449, %v370
        %v466 = vadd.f32 %v450, %v372
        %v467 = vadd.f32 %v451, %v375
        %v468 = vadd.f32 %v452, %v377
        %v469 = vadd.f32 %v303, %v389
        %v470 = vadd.f32 %v303, %v391
        %v471 = vadd.f32 %v303, %v394
        %v472 = vadd.f32 %v303, %v396
        %v473 = vadd.f32 %v303, %v399
        %v474 = vadd.f32 %v303, %v401
        %v475 = vadd.f32 %v303, %v404
        %v476 = vadd.f32 %v303, %v406
        %v477 = vadd.f32 %v304, %v418
        %v478 = vadd.f32 %v304, %v420
        %v479 = vadd.f32 %v304, %v423
        %v480 = vadd.f32 %v304, %v425
        %v481 = vadd.f32 %v304, %v428
        %v482 = vadd.f32 %v304, %v430
        %v483 = vadd.f32 %v304, %v433
        %v484 = vadd.f32 %v304, %v435
        %v485 = vmul.f32 %v461, %v469
        %v486 = vmul.f32 %v462, %v470
        %v487 = vmul.f32 %v463, %v471
        %v488 = vmul.f32 %v464, %v472
        %v489 = vmul.f32 %v465, %v473
        %v490 = vmul.f32 %v466, %v474
        %v491 = vmul.f32 %v467, %v475
        %v492 = vmul.f32 %v468, %v476
        %v493 = vpack.c.bf16 %v486, %v485
        %v494 = vpack.c.bf16 %v488, %v487
        %v495 = vpack.c.bf16 %v490, %v489
        %v496 = vpack.c.bf16 %v492, %v491
        %v497 = vld [vmem:[%s4] sm:$0xf]
        %v498 = vld [vmem:[%s4 + $0x4] sm:$0xf]
        %v499 = vld [vmem:[%s4 + $0x8] sm:$0xf]
        %v500 = vld [vmem:[%s4 + $0xc] sm:$0xf]
        %v501 = vld [vmem:[%s4 + $0x10] sm:$0xf]
        %v502 = vld [vmem:[%s4 + $0x14] sm:$0xf]
        %v503 = vld [vmem:[%s4 + $0x18] sm:$0xf]
        %v504 = vld [vmem:[%s4 + $0x1c] sm:$0xf]
        %v505 = vld [vmem:[%s4 + $0x20] sm:$0xf]
        %v506 = vld [vmem:[%s4 + $0x24] sm:$0xf]
        %v507 = vld [vmem:[%s4 + $0x28] sm:$0xf]
        %v508 = vld [vmem:[%s4 + $0x2c] sm:$0xf]
        %v509 = vld [vmem:[%s4 + $0x30] sm:$0xf]
        %v510 = vld [vmem:[%s4 + $0x34] sm:$0xf]
        %v511 = vld [vmem:[%s4 + $0x38] sm:$0xf]
        %v512 = vld [vmem:[%s4 + $0x3c] sm:$0xf]
        %v529 = vunpack.c.l.b16 %v497
        %v530 = vunpack.c.l.b16 %v498
        %v531 = vunpack.c.l.b16 %v499
        %v532 = vunpack.c.l.b16 %v500
        %v533 = vunpack.c.l.b16 %v501
        %v534 = vunpack.c.l.b16 %v502
        %v535 = vunpack.c.l.b16 %v503
        %v536 = vunpack.c.l.b16 %v504
        %v537 = vunpack.c.l.b16 %v505
        %v538 = vunpack.c.l.b16 %v506
        %v539 = vunpack.c.l.b16 %v507
        %v540 = vunpack.c.l.b16 %v508
        %v541 = vunpack.c.l.b16 %v509
        %v542 = vunpack.c.l.b16 %v510
        %v543 = vunpack.c.l.b16 %v511
        %v544 = vunpack.c.l.b16 %v512
        %v545 = vpack.c.b16 %v530, %v529
        %v546 = vpack.c.b16 %v532, %v531
        %v547 = vpack.c.b16 %v534, %v533
        %v548 = vpack.c.b16 %v536, %v535
        %v549 = vpack.c.b16 %v538, %v537
        %v550 = vpack.c.b16 %v540, %v539
        %v551 = vpack.c.b16 %v542, %v541
        %v552 = vpack.c.b16 %v544, %v543
        %561 = vmatpush.bf16.msra.mxu0 %v552
        %562 = vmatpush.bf16.msra.mxu0 %v551
        %563 = vmatpush.bf16.msra.mxu0 %v550
        %564 = vmatpush.bf16.msra.mxu0 %v549
        %565 = vmatpush.bf16.msra.mxu0 %v548
        %566 = vmatpush.bf16.msra.mxu0 %v547
        %567 = vmatpush.bf16.msra.mxu0 %v546
        %568 = vmatpush.bf16.msra.mxu0 %v545
        %569 = vmatmul.bf16.gmra.mxu0 %v493
        %v570 = vpop.f32.mrf.mxu0
        %v571 = vadd.f32 0.0, %v570
        %v572 = vpop.f32.mrf.mxu0
        %v573 = vadd.f32 0.0, %v572
        %574 = vmatmul.bf16.gmra.mxu0 %v494
        %v575 = vpop.f32.mrf.mxu0
        %v576 = vadd.f32 0.0, %v575
        %v577 = vpop.f32.mrf.mxu0
        %v578 = vadd.f32 0.0, %v577
        %579 = vmatmul.bf16.gmra.mxu0 %v495
        %v580 = vpop.f32.mrf.mxu0
        %v581 = vadd.f32 0.0, %v580
        %v582 = vpop.f32.mrf.mxu0
        %v583 = vadd.f32 0.0, %v582
        %584 = vmatmul.bf16.gmra.mxu0 %v496
        %v585 = vpop.f32.mrf.mxu0
        %v586 = vadd.f32 0.0, %v585
        %v587 = vpop.f32.mrf.mxu0
        %v588 = vadd.f32 0.0, %v587
        %589 = vdwg.mxu0
        %v590 = vrot.slane %v571, 4
        %v591 = vmax.f32 %v571, %v590
        %v592 = vrot.slane %v591, 2
        %v593 = vmax.f32 %v591, %v592
        %v594 = vrot.slane %v593, 1
        %v595 = vmax.f32 %v593, %v594
        %v596 = vrot.slane %v573, 4
        %v597 = vmax.f32 %v573, %v596
        %v598 = vrot.slane %v597, 2
        %v599 = vmax.f32 %v597, %v598
        %v600 = vrot.slane %v599, 1
        %v601 = vmax.f32 %v599, %v600
        %v602 = vrot.slane %v576, 4
        %v603 = vmax.f32 %v576, %v602
        %v604 = vrot.slane %v603, 2
        %v605 = vmax.f32 %v603, %v604
        %v606 = vrot.slane %v605, 1
        %v607 = vmax.f32 %v605, %v606
        %v608 = vrot.slane %v578, 4
        %v609 = vmax.f32 %v578, %v608
        %v610 = vrot.slane %v609, 2
        %v611 = vmax.f32 %v609, %v610
        %v612 = vrot.slane %v611, 1
        %v613 = vmax.f32 %v611, %v612
        %v614 = vrot.slane %v581, 4
        %v615 = vmax.f32 %v581, %v614
        %v616 = vrot.slane %v615, 2
        %v617 = vmax.f32 %v615, %v616
        %v618 = vrot.slane %v617, 1
        %v619 = vmax.f32 %v617, %v618
        %v620 = vrot.slane %v583, 4
        %v621 = vmax.f32 %v583, %v620
        %v622 = vrot.slane %v621, 2
        %v623 = vmax.f32 %v621, %v622
        %v624 = vrot.slane %v623, 1
        %v625 = vmax.f32 %v623, %v624
        %v626 = vrot.slane %v586, 4
        %v627 = vmax.f32 %v586, %v626
        %v628 = vrot.slane %v627, 2
        %v629 = vmax.f32 %v627, %v628
        %v630 = vrot.slane %v629, 1
        %v631 = vmax.f32 %v629, %v630
        %v632 = vrot.slane %v588, 4
        %v633 = vmax.f32 %v588, %v632
        %v634 = vrot.slane %v633, 2
        %v635 = vmax.f32 %v633, %v634
        %v636 = vrot.slane %v635, 1
        %v637 = vmax.f32 %v635, %v636
        %v638 = vsub.f32 %v571, %v595
        %v639 = vsub.f32 %v573, %v601
        %v640 = vsub.f32 %v576, %v607
        %v641 = vsub.f32 %v578, %v613
        %v642 = vsub.f32 %v581, %v619
        %v643 = vsub.f32 %v583, %v625
        %v644 = vsub.f32 %v586, %v631
        %v645 = vsub.f32 %v588, %v637
        %v646 = vmul.f32 %v638, 1.442695
        %v647 = vpow.pop %v646
        %v648 = vmul.f32 %v639, 1.442695
        %v649 = vpow.pop %v648
        %v650 = vmul.f32 %v640, 1.442695
        %v651 = vpow.pop %v650
        %v652 = vmul.f32 %v641, 1.442695
        %v653 = vpow.pop %v652
        %v654 = vmul.f32 %v642, 1.442695
        %v655 = vpow.pop %v654
        %v656 = vmul.f32 %v643, 1.442695
        %v657 = vpow.pop %v656
        %v658 = vmul.f32 %v644, 1.442695
        %v659 = vpow.pop %v658
        %v660 = vmul.f32 %v645, 1.442695
        %v661 = vpow.pop %v660
        %v662 = vrot.slane %v647, 4
        %v663 = vadd.f32 %v647, %v662
        %v664 = vrot.slane %v663, 2
        %v665 = vadd.f32 %v663, %v664
        %v666 = vrot.slane %v665, 1
        %v667 = vadd.f32 %v665, %v666
        %v668 = vrot.slane %v649, 4
        %v669 = vadd.f32 %v649, %v668
        %v670 = vrot.slane %v669, 2
        %v671 = vadd.f32 %v669, %v670
        %v672 = vrot.slane %v671, 1
        %v673 = vadd.f32 %v671, %v672
        %v674 = vrot.slane %v651, 4
        %v675 = vadd.f32 %v651, %v674
        %v676 = vrot.slane %v675, 2
        %v677 = vadd.f32 %v675, %v676
        %v678 = vrot.slane %v677, 1
        %v679 = vadd.f32 %v677, %v678
        %v680 = vrot.slane %v653, 4
        %v681 = vadd.f32 %v653, %v680
        %v682 = vrot.slane %v681, 2
        %v683 = vadd.f32 %v681, %v682
        %v684 = vrot.slane %v683, 1
        %v685 = vadd.f32 %v683, %v684
        %v686 = vrot.slane %v655, 4
        %v687 = vadd.f32 %v655, %v686
        %v688 = vrot.slane %v687, 2
        %v689 = vadd.f32 %v687, %v688
        %v690 = vrot.slane %v689, 1
        %v691 = vadd.f32 %v689, %v690
        %v692 = vrot.slane %v657, 4
        %v693 = vadd.f32 %v657, %v692
        %v694 = vrot.slane %v693, 2
        %v695 = vadd.f32 %v693, %v694
        %v696 = vrot.slane %v695, 1
        %v697 = vadd.f32 %v695, %v696
        %v698 = vrot.slane %v659, 4
        %v699 = vadd.f32 %v659, %v698
        %v700 = vrot.slane %v699, 2
        %v701 = vadd.f32 %v699, %v700
        %v702 = vrot.slane %v701, 1
        %v703 = vadd.f32 %v701, %v702
        %v704 = vrot.slane %v661, 4
        %v705 = vadd.f32 %v661, %v704
        %v706 = vrot.slane %v705, 2
        %v707 = vadd.f32 %v705, %v706
        %v708 = vrot.slane %v707, 1
        %v709 = vadd.f32 %v707, %v708
        %v710 = vmul.f32 %v647, %v477
        %v711 = vmul.f32 %v649, %v478
        %v712 = vmul.f32 %v651, %v479
        %v713 = vmul.f32 %v653, %v480
        %v714 = vmul.f32 %v655, %v481
        %v715 = vmul.f32 %v657, %v482
        %v716 = vmul.f32 %v659, %v483
        %v717 = vmul.f32 %v661, %v484
        %v718 = vrot.slane %v710, 4
        %v719 = vadd.f32 %v710, %v718
        %v720 = vrot.slane %v719, 2
        %v721 = vadd.f32 %v719, %v720
        %v722 = vrot.slane %v721, 1
        %v723 = vadd.f32 %v721, %v722
        %v724 = vrot.slane %v711, 4
        %v725 = vadd.f32 %v711, %v724
        %v726 = vrot.slane %v725, 2
        %v727 = vadd.f32 %v725, %v726
        %v728 = vrot.slane %v727, 1
        %v729 = vadd.f32 %v727, %v728
        %v730 = vrot.slane %v712, 4
        %v731 = vadd.f32 %v712, %v730
        %v732 = vrot.slane %v731, 2
        %v733 = vadd.f32 %v731, %v732
        %v734 = vrot.slane %v733, 1
        %v735 = vadd.f32 %v733, %v734
        %v736 = vrot.slane %v713, 4
        %v737 = vadd.f32 %v713, %v736
        %v738 = vrot.slane %v737, 2
        %v739 = vadd.f32 %v737, %v738
        %v740 = vrot.slane %v739, 1
        %v741 = vadd.f32 %v739, %v740
        %v742 = vrot.slane %v714, 4
        %v743 = vadd.f32 %v714, %v742
        %v744 = vrot.slane %v743, 2
        %v745 = vadd.f32 %v743, %v744
        %v746 = vrot.slane %v745, 1
        %v747 = vadd.f32 %v745, %v746
        %v748 = vrot.slane %v715, 4
        %v749 = vadd.f32 %v715, %v748
        %v750 = vrot.slane %v749, 2
        %v751 = vadd.f32 %v749, %v750
        %v752 = vrot.slane %v751, 1
        %v753 = vadd.f32 %v751, %v752
        %v754 = vrot.slane %v716, 4
        %v755 = vadd.f32 %v716, %v754
        %v756 = vrot.slane %v755, 2
        %v757 = vadd.f32 %v755, %v756
        %v758 = vrot.slane %v757, 1
        %v759 = vadd.f32 %v757, %v758
        %v760 = vrot.slane %v717, 4
        %v761 = vadd.f32 %v717, %v760
        %v762 = vrot.slane %v761, 2
        %v763 = vadd.f32 %v761, %v762
        %v764 = vrot.slane %v763, 1
        %v765 = vadd.f32 %v763, %v764
        %v766 = vrcp.pop %v667
        %v767 = vrcp.pop %v673
        %v768 = vrcp.pop %v679
        %v769 = vrcp.pop %v685
        %v770 = vrcp.pop %v691
        %v771 = vrcp.pop %v697
        %v772 = vrcp.pop %v703
        %v773 = vrcp.pop %v709
        %v774 = vmul.f32 %v723, %v766
        %v775 = vmul.f32 %v729, %v767
        %v776 = vmul.f32 %v735, %v768
        %v777 = vmul.f32 %v741, %v769
        %v778 = vmul.f32 %v747, %v770
        %v779 = vmul.f32 %v753, %v771
        %v780 = vmul.f32 %v759, %v772
        %v781 = vmul.f32 %v765, %v773
        %vm790 = vcmask 1041409
        %v791 = vsel %vm790, %v775, %v774
        %vm792 = vcmask 1042434
        %v793 = vsel %vm792, %v776, %v791
        %vm794 = vcmask 1043459
        %v795 = vsel %vm794, %v777, %v793
        %vm796 = vcmask 1044484
        %v797 = vsel %vm796, %v778, %v795
        %vm798 = vcmask 1045509
        %v799 = vsel %vm798, %v779, %v797
        %vm800 = vcmask 1046534
        %v801 = vsel %vm800, %v780, %v799
        %vm802 = vcmask 1047559
        %v803 = vsel %vm802, %v781, %v801
        %805 = vst [vmem:[%s278] sm:$0xff] %v803
        %s806 = sand.u32 %s165, 1
        %s807 = scalar_lea.sflag [#allocation3], %s806
        %s808 = sand.u32 %s165, 1
        %s809 = smul.addr %s808, 8
        %s810 = scalar_lea.vmem [#allocation2], %s809
        // Predicated region
        $region41: #{tpu_custom_call.1} parent=39 // pred_check
          %p811 = pneg %p175
        $region42: #{tpu_custom_call.1} parent=39 // pred_check_branch
          %813 = sbr.rel (%p811) target = $region44
        $region43: #{tpu_custom_call.1} parent=39 // pred_region
          %815 = vsyncadd %s807, 0
          %s816 = sadd.s32 %s24, %s23
          %s817 = smul.addr %s816, 8
          %s818 = scalar_lea.hbm %s5, %s817
          %s820 = sshll.u32 %s810, 4
          %s821 = int_to_ptr.vmem [resolvable:$true] %s820
          %s822 = sshll.u32 %s818, 4
          %s823 = int_to_ptr.hbm [resolvable:$true] %s822
          %825 = dma.vmem_to_hbm [thread:$0]  %s821, 128, %s823, %s807
        $region44: #{tpu_custom_call.1} parent=39 // pred_fallthru
          _
      $region40: #{tpu_custom_call.1} parent=5 // pred_fallthru
        _
      %p826 = scmp.le.s32.totalorder 2, %s14
      // Predicated region
      $region45: #{tpu_custom_call.1} parent=5 // pred_check
        %p827 = pneg %p826
      $region46: #{tpu_custom_call.1} parent=5 // pred_check_branch
        %829 = sbr.rel (%p827) target = $region48
      $region47: #{tpu_custom_call.1} parent=5 // pred_region
        %s830 = ssub.s32 %s14, 2
        // Predicated region
        $region49: #{tpu_custom_call.1} parent=47 // pred_check
          %p831 = pneg %p181
        $region50: #{tpu_custom_call.1} parent=47 // pred_check_branch
          %833 = sbr.rel (%p831) target = $region52
        $region51: #{tpu_custom_call.1} parent=47 // pred_region
          %s834 = sand.u32 %s166, 1
          %s835 = scalar_lea.sflag [#allocation3], %s834
          %s836 = sand.u32 %s166, 1
          %s837 = smul.addr %s836, 8
          %s838 = scalar_lea.vmem [#allocation2], %s837
          %840 = dma.done %s835, 128
        $region52: #{tpu_custom_call.1} parent=47 // pred_fallthru
          _
      $region48: #{tpu_custom_call.1} parent=5 // pred_fallthru
        _
    $region6: #{tpu_custom_call.1} parent=1 // loop_footer
      %s18 = sadd.s32 1, %s14
    $region7: #{tpu_custom_call.1} parent=1 // loop_footer_branch
      %13 = sbr.rel target = $region3
    $region8: #{tpu_custom_call.1} parent=1 // loop_exit
      _
    %841 = vsyncpa [#allocation3], 1
    %s842 = scalar_lea.sflag [#allocation3], 1
    %843 = vsyncpa %s842, 1

</llo_original>
